<compile_context>
chip_gen: v7x
topology: tpu7x:2x2x1
jax: 0.10.0
libtpu: 0.0.40
codegen_flags: <defaults>
</compile_context>

<pallas_src>
import functools

import jax
import jax.numpy as jnp
import numpy as np
from jax import lax
from jax.experimental import pallas as pl
from jax.experimental.pallas import tpu as pltpu


def _round_up(x, m):
    return ((x + m - 1) // m) * m


def _cdiv(a, b):
    return (a + b - 1) // b


def _tile_for(dim, cap, mult):
    """Largest legal tile <= cap: the full dim if it fits, else a multiple of `mult`."""
    if dim <= cap:
        return dim
    return max(mult, (cap // mult) * mult)


# ----------------------------------------------------------------------------
# Pallas kernels
# ----------------------------------------------------------------------------
def _distogram_kernel(logits_ref, pos_ref, posT_ref, mrow_ref, mcol_ref,
                      num_ref, *, boundaries, n_valid, row_tile):
    # logits_ref: [T, N, NB]   native layout (bins on the minor axis)
    # pos_ref:    [T, 3]       row-tile atom positions
    # posT_ref:   [3, N]       all atom positions, transposed
    # mrow_ref:   [T, 1]       row mask tile
    # mcol_ref:   [1, N]       column mask
    # num_ref:    [8, 128]     per-tile partial numerator (scalar broadcast)
    pos = pos_ref[...].astype(jnp.float32)
    posT = posT_ref[...].astype(jnp.float32)
    t = pos.shape[0]
    n = posT.shape[1]

    # Pairwise squared distances, coordinate-wise (lane-dense [T, N] planes).
    d2 = jnp.zeros((t, n), jnp.float32)
    for k in range(3):
        diff = pos[:, k:k + 1] - posT[k:k + 1, :]
        d2 = d2 + diff * diff

    # True bin index via a short static unroll over squared boundaries.
    true_bins = jnp.zeros((t, n), jnp.int32)
    for b in boundaries:
        true_bins = true_bins + (d2 > b).astype(jnp.int32)

    # Softmax cross-entropy over the minor (bin) axis; block cast once.
    lg = logits_ref[...].astype(jnp.float32)                      # [T, N, NB]
    m = jnp.max(lg, axis=-1, keepdims=True)                       # [T, N, 1]
    ssum = jnp.sum(jnp.exp(lg - m), axis=-1)                      # [T, N]
    lse = jnp.log(ssum) + m[:, :, 0]                              # [T, N]
    bins_iota = lax.broadcasted_iota(jnp.int32, lg.shape, 2)
    picked = jnp.sum(jnp.where(bins_iota == true_bins[:, :, None], lg, 0.0),
                     axis=-1)                                     # [T, N]
    errors = lse - picked                                         # [T, N]

    sq_mask = (mrow_ref[...].astype(jnp.float32)
               * mcol_ref[...].astype(jnp.float32))               # [T, N]
    # Row-validity mask: the last block may hang off the end of the array; the
    # where() *selects*, so garbage (even NaN/Inf) in invalid rows is dropped.
    row_idx = (lax.broadcasted_iota(jnp.int32, (t, n), 0)
               + pl.program_id(0) * row_tile)
    valid = row_idx < n_valid
    contrib = jnp.where(valid, errors * sq_mask, 0.0)
    num = jnp.sum(contrib, keepdims=True)                         # (1, 1)
    num_ref[...] = jnp.broadcast_to(num, num_ref.shape)


def _masked_msa_kernel(logits_ref, labels_ref, mask_ref, num_ref, *,
                       s_valid, n_valid, s_tile, n_tile):
    # logits_ref: [St, Nt, C]  native layout (classes on the minor axis)
    # labels_ref: [St, Nt] int32 ; mask_ref: [St, Nt]
    lg = logits_ref[...].astype(jnp.float32)
    labels = labels_ref[...]
    msk = mask_ref[...].astype(jnp.float32)

    m = jnp.max(lg, axis=-1, keepdims=True)                       # [St, Nt, 1]
    ssum = jnp.sum(jnp.exp(lg - m), axis=-1)                      # [St, Nt]
    lse = jnp.log(ssum) + m[:, :, 0]                              # [St, Nt]
    cls_iota = lax.broadcasted_iota(jnp.int32, lg.shape, 2)
    picked = jnp.sum(jnp.where(cls_iota == labels[:, :, None], lg, 0.0),
                     axis=-1)                                     # [St, Nt]
    errors = lse - picked

    s_idx = (lax.broadcasted_iota(jnp.int32, errors.shape, 0)
             + pl.program_id(0) * s_tile)
    n_idx = (lax.broadcasted_iota(jnp.int32, errors.shape, 1)
             + pl.program_id(1) * n_tile)
    valid = (s_idx < s_valid) & (n_idx < n_valid)
    contrib = jnp.where(valid, errors * msk, 0.0)
    num = jnp.sum(contrib, keepdims=True)
    num_ref[...] = jnp.broadcast_to(num, num_ref.shape)


def _fape_kernel(rp_ref, gl_ref, pp_ref, fms_ref, pm_ref, o_ref, *,
                 eps, clamp, f_valid, f_tile):
    # Frames on sublanes, points on lanes.
    #   rp_ref : [1, Ft, 12]  inverted predicted frames for this (b, f-tile)
    #   gl_ref : [3, Ft, P]   PRECOMPUTED ground-truth local coords (hoisted)
    #   pp_ref : [1, 3, P]    predicted backbone atom coords (x,y,z rows)
    #   fms_ref: [Ft, 1]      frames mask pre-scaled by 1/length_scale
    #   pm_ref : [1, P]       positions mask
    #   o_ref  : [8, 128]     per-(f-tile, b) partial numerator
    rp = rp_ref[0].astype(jnp.float32)
    pp = pp_ref[0].astype(jnp.float32)
    ft = rp.shape[0]
    p = pp.shape[1]

    sq = jnp.zeros((ft, p), jnp.float32)
    for k in range(3):  # output coordinate k of R_inv @ x + t_inv
        lp = (rp[:, 3 * k + 0:3 * k + 1] * pp[0:1, :]
              + rp[:, 3 * k + 1:3 * k + 2] * pp[1:2, :]
              + rp[:, 3 * k + 2:3 * k + 3] * pp[2:3, :]
              + rp[:, 9 + k:10 + k])
        d = lp - gl_ref[k].astype(jnp.float32)
        sq = sq + d * d

    err = jnp.clip(jnp.sqrt(sq + eps), 0.0, clamp)                # [Ft, P]
    per_frame = jnp.sum(err * pm_ref[...].astype(jnp.float32), axis=1,
                        keepdims=True)                            # [Ft, 1]
    f_idx = (lax.broadcasted_iota(jnp.int32, (ft, 1), 0)
             + pl.program_id(0) * f_tile)
    masked = jnp.where(f_idx < f_valid,
                       per_frame * fms_ref[...].astype(jnp.float32), 0.0)
    num = jnp.sum(masked, keepdims=True)
    o_ref[...] = jnp.broadcast_to(num, o_ref.shape)


# ----------------------------------------------------------------------------
# Pallas wrappers
# ----------------------------------------------------------------------------
def distogram_loss_pallas(logits, atom_position, atom_mask, *, min_bin,
                          max_bin, no_bins, eps, **_):
    n = logits.shape[0]
    # Row tile sized from a per-buffer VMEM budget (VMEM lane-pads the bin axis
    # to a multiple of 128); keeps several "parallel" tiles for v7x megacore.
    lane_nb = max(128, _round_up(no_bins, 128))
    bytes_per_row = n * lane_nb * 4
    budget = 6 * 1024 * 1024
    cap = max(8, min(128, ((budget // max(bytes_per_row, 1)) // 8) * 8))
    row_tile = _tile_for(n, cap, 8)
    num_tiles = _cdiv(n, row_tile)

    pos = atom_position.astype(jnp.float32)                       # [n, 3]
    msk = atom_mask.astype(jnp.float32)                           # [n]
    boundaries = tuple(
        float(b) for b in np.square(
            np.linspace(min_bin, max_bin, no_bins - 1, dtype=np.float32)))

    kernel = functools.partial(_distogram_kernel, boundaries=boundaries,
                               n_valid=n, row_tile=row_tile)

    num_out = pl.pallas_call(
        kernel,
        grid=(num_tiles,),
        in_specs=[
            pl.BlockSpec((row_tile, n, no_bins), lambda i: (i, 0, 0)),
            pl.BlockSpec((row_tile, 3), lambda i: (i, 0)),
            pl.BlockSpec((3, n), lambda i: (0, 0)),
            pl.BlockSpec((row_tile, 1), lambda i: (i, 0)),
            pl.BlockSpec((1, n), lambda i: (0, 0)),
        ],
        out_specs=pl.BlockSpec((8, 128), lambda i: (i, 0)),
        out_shape=jax.ShapeDtypeStruct((num_tiles * 8, 128), jnp.float32),
        compiler_params=pltpu.CompilerParams(
            dimension_semantics=("parallel",),
            vmem_limit_bytes=48 * 1024 * 1024),
    )(logits, pos, pos.T, msk.reshape(n, 1), msk.reshape(1, n))

    num = jnp.sum(num_out.reshape(num_tiles, 8, 128)[:, 0, 0])
    den = jnp.sum(msk) ** 2  # sum_ij mask_i*mask_j == (sum mask)^2 (JAX side)
    return num / (eps + den)


def masked_msa_loss_pallas(logits, true_msa, bert_mask, *, num_classes, eps,
                           **_):
    s, n, c = logits.shape
    assert c == num_classes
    s_tile = _tile_for(s, 64, 8)       # bound block size even for deep MSAs
    n_tile = _tile_for(n, 128, 128)    # >=2 residue tiles once n >= 256
    s_tiles, n_tiles = _cdiv(s, s_tile), _cdiv(n, n_tile)

    labels = true_msa.astype(jnp.int32)
    msk = bert_mask.astype(jnp.float32)

    kernel = functools.partial(_masked_msa_kernel, s_valid=s, n_valid=n,
                               s_tile=s_tile, n_tile=n_tile)

    num_out = pl.pallas_call(
        kernel,
        grid=(s_tiles, n_tiles),
        in_specs=[
            pl.BlockSpec((s_tile, n_tile, c), lambda si, ni: (si, ni, 0)),
            pl.BlockSpec((s_tile, n_tile), lambda si, ni: (si, ni)),
            pl.BlockSpec((s_tile, n_tile), lambda si, ni: (si, ni)),
        ],
        out_specs=pl.BlockSpec((8, 128),
                               lambda si, ni: (si * n_tiles + ni, 0)),
        out_shape=jax.ShapeDtypeStruct((s_tiles * n_tiles * 8, 128),
                                       jnp.float32),
        compiler_params=pltpu.CompilerParams(
            dimension_semantics=("parallel", "parallel"),
            vmem_limit_bytes=32 * 1024 * 1024),
    )(logits, labels, msk)

    num = jnp.sum(num_out.reshape(s_tiles * n_tiles, 8, 128)[:, 0, 0])
    den = jnp.sum(msk)  # denominator from the mask, in JAX
    scale = 0.5
    return scale * num / (eps + scale * den)


def fape_backbone_pallas(pred_params, gt_local, pred_pos_T, frames_mask,
                         pos_mask, *, clamp_distance, loss_unit_distance, eps):
    B, F, _ = pred_params.shape
    P = pred_pos_T.shape[-1]
    f_tile = _tile_for(F, 128, 8)
    f_tiles = _cdiv(F, f_tile)

    fm_scaled = (frames_mask.astype(jnp.float32)
                 / loss_unit_distance).reshape(F, 1)
    pm = pos_mask.astype(jnp.float32).reshape(1, P)

    kernel = functools.partial(_fape_kernel, eps=eps, clamp=clamp_distance,
                               f_valid=F, f_tile=f_tile)

    out = pl.pallas_call(
        kernel,
        grid=(f_tiles, B),  # f outer so the gt-local block stays resident over b
        in_specs=[
            pl.BlockSpec((1, f_tile, 12), lambda f, b: (b, f, 0)),
            pl.BlockSpec((3, f_tile, P), lambda f, b: (0, f, 0)),
            pl.BlockSpec((1, 3, P), lambda f, b: (b, 0, 0)),
            pl.BlockSpec((f_tile, 1), lambda f, b: (f, 0)),
            pl.BlockSpec((1, P), lambda f, b: (0, 0)),
        ],
        out_specs=pl.BlockSpec((8, 128), lambda f, b: (f * B + b, 0)),
        out_shape=jax.ShapeDtypeStruct((f_tiles * B * 8, 128), jnp.float32),
        compiler_params=pltpu.CompilerParams(
            dimension_semantics=("parallel", "parallel"),
            vmem_limit_bytes=32 * 1024 * 1024),
    )(pred_params, gt_local, pred_pos_T, fm_scaled, pm)

    total = jnp.sum(out.reshape(f_tiles * B, 8, 128)[:, 0, 0])
    frames_denom = eps + jnp.sum(frames_mask.astype(jnp.float32))
    pos_denom = eps + jnp.sum(pos_mask.astype(jnp.float32))
    return (total / B) / (frames_denom * pos_denom)


# ----------------------------------------------------------------------------
# JAX glue (atom gathering, rigid inversion, loss assembly)
# ----------------------------------------------------------------------------
# TODO(synk): atom ordering is synthetic (C4'=0, P=1, N1=2, N9=3); real demofold
# uses its own residue-constants atom table.
ATOM_INDEX = {"C4'": 0, "P": 1, "N1": 2, "N9": 3}


def make_atom(name, all_atom_positions, all_atom_mask=None):
    idx = ATOM_INDEX[name]
    pos = all_atom_positions[..., idx, :]
    if all_atom_mask is not None:
        return pos, all_atom_mask[..., idx]
    return pos


def glycos_N_fn(restype, all_atom_positions, all_atom_mask=None):
    # purines (A=0, G=2) -> N9, pyrimidines -> N1
    is_purine = (restype == 0) | (restype == 2)
    n1 = all_atom_positions[..., ATOM_INDEX["N1"], :]
    n9 = all_atom_positions[..., ATOM_INDEX["N9"], :]
    pos = jnp.where(is_purine[..., None], n9, n1)
    if all_atom_mask is not None:
        m = jnp.where(is_purine, all_atom_mask[..., ATOM_INDEX["N9"]],
                      all_atom_mask[..., ATOM_INDEX["N1"]])
        return pos, m
    return pos


def rigid_inverse_params(T):
    """[..., 4, 4] rigid -> [..., 12] (row-major R_inv, then t_inv)."""
    R = T[..., :3, :3]
    t = T[..., :3, 3]
    R_inv = jnp.swapaxes(R, -1, -2)
    t_inv = -jnp.einsum('...ij,...j->...i', R_inv, t)
    flat_R = R_inv.reshape(R_inv.shape[:-2] + (9,))
    return jnp.concatenate([flat_R, t_inv], axis=-1).astype(jnp.float32)


def _backbone_atoms(out, batch):
    traj = out["sm"]["frames"]                       # [B, N, 4, 4]
    pred_atom_positions = out["sm"]["positions"]     # [B, N, A, 3]
    restype = batch["restype"]
    aap = batch["all_atom_positions"]
    aam = batch["all_atom_mask"]
    B, N = traj.shape[0], traj.shape[1]

    c4, c4_m = make_atom("C4'", aap, aam)
    p_, p_m = make_atom("P", aap, aam)
    gn, gn_m = glycos_N_fn(restype, aap, aam)
    bb_gt = jnp.stack([c4, p_, gn], axis=-2).reshape(N * 3, 3)
    bb_gt_mask = jnp.stack([c4_m, p_m, gn_m], axis=-1).reshape(N * 3)

    c4_p = make_atom("C4'", pred_atom_positions)
    p_p = make_atom("P", pred_atom_positions)
    restype_t = jnp.tile(restype[None], (B,) + (1,) * restype.ndim)
    gn_p = glycos_N_fn(restype_t, pred_atom_positions)
    bb_pred = jnp.stack([c4_p, p_p, gn_p], axis=-2).reshape(B, N * 3, 3)
    return bb_gt, bb_gt_mask, bb_pred


def fape_loss_pallas(out, batch, cfg):
    traj = out["sm"]["frames"]
    gt_T = batch["backbone_rigid_tensor"]
    gt_mask = batch["backbone_rigid_mask"]

    bb_gt, bb_gt_mask, bb_pred = _backbone_atoms(out, batch)

    pred_params = rigid_inverse_params(traj)                       # [B, N, 12]

    # Ground-truth local coordinates hoisted out of the kernel grid
    # (block-invariant across structure-module blocks b): [3, F, P].
    Rg = gt_T[..., :3, :3].astype(jnp.float32)
    tg = gt_T[..., :3, 3].astype(jnp.float32)
    Rg_inv = jnp.swapaxes(Rg, -1, -2)
    tg_inv = -jnp.einsum('fij,fj->fi', Rg_inv, tg)
    gt_local = (jnp.einsum('fij,pj->ifp', Rg_inv, bb_gt.astype(jnp.float32))
                + jnp.transpose(tg_inv)[:, :, None])

    pred_pos_T = jnp.swapaxes(bb_pred, -1, -2).astype(jnp.float32)  # [B, 3, P]

    return fape_backbone_pallas(
        pred_params, gt_local, pred_pos_T, gt_mask, bb_gt_mask,
        clamp_distance=cfg["clamp_distance"],
        loss_unit_distance=cfg["loss_unit_distance"], eps=cfg["eps"])


def structure_loss(out, batch, config):
    """JAX/Pallas equivalent of StructureLoss.forward (returns cum_loss, losses)."""
    losses = {
        "distogram": distogram_loss_pallas(
            out["distogram_logits"], batch["glycos_N"], batch["glycos_N_mask"],
            **config["distogram"]),
        "fape": fape_loss_pallas(out, batch, config["fape"]["backbone"]),
        "masked_msa": masked_msa_loss_pallas(
            out["masked_msa_logits"], batch["true_msa"], batch["bert_mask"],
            **config["masked_msa"]),
    }
    cum_loss = jnp.float32(0.0)
    for name, val in losses.items():
        weight = config[name]["weight"]
        val = jnp.where(jnp.isnan(val) | jnp.isinf(val), jnp.float32(0.0), val)
        cum_loss = cum_loss + weight * val
    seq_len = jnp.mean(batch["seq_length"].astype(jnp.float32))
    crop_len = batch["restype"].shape[-1]
    cum_loss = cum_loss * jnp.sqrt(jnp.minimum(seq_len, jnp.float32(crop_len)))
    return cum_loss, losses


# ----------------------------------------------------------------------------
# Pure-JAX reference (mirrors the PyTorch code) for self-verification
# ----------------------------------------------------------------------------
def ref_distogram(logits, pos, mask, min_bin, max_bin, no_bins, eps, **_):
    boundaries = jnp.linspace(min_bin, max_bin, no_bins - 1) ** 2
    dists = jnp.sum((pos[..., None, :] - pos[..., None, :, :]) ** 2, -1,
                    keepdims=True)
    true_bins = jnp.sum(dists > boundaries, -1)
    labels = jax.nn.one_hot(true_bins, no_bins)
    errors = -jnp.sum(labels * jax.nn.log_softmax(logits, -1), -1)
    sq = mask[..., None] * mask[..., None, :]
    denom = eps + jnp.sum(sq, axis=(-1, -2))
    mean = jnp.sum(errors * sq, -1) / denom[..., None]
    return jnp.mean(jnp.sum(mean, -1))


def ref_masked_msa(logits, true_msa, bert_mask, num_classes, eps, **_):
    labels = jax.nn.one_hot(true_msa, num_classes)
    errors = -jnp.sum(labels * jax.nn.log_softmax(logits, -1), -1)
    loss = jnp.sum(errors * bert_mask, -1)
    denom = eps + jnp.sum(0.5 * bert_mask, axis=(-1, -2))
    loss = jnp.sum(loss / denom[..., None], -1) * 0.5
    return jnp.mean(loss)


def ref_fape(out, batch, cfg):
    traj = out["sm"]["frames"]
    gt_T = batch["backbone_rigid_tensor"]
    gt_mask = batch["backbone_rigid_mask"]
    eps, clamp, ls = cfg["eps"], cfg["clamp_distance"], cfg["loss_unit_distance"]

    bb_gt, bb_gt_mask, bb_pred = _backbone_atoms(out, batch)

    Rp = traj[..., :3, :3]; tp = traj[..., :3, 3]
    Rp_inv = jnp.swapaxes(Rp, -1, -2)
    tp_inv = -jnp.einsum('...ij,...j->...i', Rp_inv, tp)
    Rg = gt_T[..., :3, :3]; tg = gt_T[..., :3, 3]
    Rg_inv = jnp.swapaxes(Rg, -1, -2)
    tg_inv = -jnp.einsum('...ij,...j->...i', Rg_inv, tg)

    local_p = jnp.einsum('bfij,bpj->bfpi', Rp_inv, bb_pred) + tp_inv[:, :, None, :]
    local_t = jnp.einsum('fij,pj->fpi', Rg_inv, bb_gt) + tg_inv[:, None, :]
    err = jnp.sqrt(jnp.sum((local_p - local_t[None]) ** 2, -1) + eps)
    err = jnp.clip(err, 0.0, clamp)
    ne = (err / ls) * gt_mask[None, :, None] * bb_gt_mask[None, None, :]
    ne = jnp.sum(ne, -1) / (eps + jnp.sum(gt_mask))
    ne = jnp.sum(ne, -1) / (eps + jnp.sum(bb_gt_mask))
    return jnp.mean(ne)


def ref_structure_loss(out, batch, config):
    losses = {
        "distogram": ref_distogram(out["distogram_logits"], batch["glycos_N"],
                                   batch["glycos_N_mask"], **config["distogram"]),
        "fape": ref_fape(out, batch, config["fape"]["backbone"]),
        "masked_msa": ref_masked_msa(out["masked_msa_logits"], batch["true_msa"],
                                     batch["bert_mask"], **config["masked_msa"]),
    }
    cum = jnp.float32(0.0)
    for name, val in losses.items():
        val = jnp.where(jnp.isnan(val) | jnp.isinf(val), jnp.float32(0.0), val)
        cum = cum + config[name]["weight"] * val
    seq_len = jnp.mean(batch["seq_length"].astype(jnp.float32))
    crop_len = batch["restype"].shape[-1]
    return cum * jnp.sqrt(jnp.minimum(seq_len, jnp.float32(crop_len)))


# ----------------------------------------------------------------------------
# Deterministic test data
# ----------------------------------------------------------------------------
def quat_to_rot(q):
    q = q / jnp.linalg.norm(q, axis=-1, keepdims=True)
    w, x, y, z = q[..., 0], q[..., 1], q[..., 2], q[..., 3]
    rows = [1 - 2 * (y * y + z * z), 2 * (x * y - w * z), 2 * (x * z + w * y),
            2 * (x * y + w * z), 1 - 2 * (x * x + z * z), 2 * (y * z - w * x),
            2 * (x * z - w * y), 2 * (y * z + w * x), 1 - 2 * (x * x + y * y)]
    return jnp.stack(rows, axis=-1).reshape(q.shape[:-1] + (3, 3))


def make_4x4(quat, trans):
    R = quat_to_rot(quat)
    batch = R.shape[:-2]
    top = jnp.concatenate([R, trans[..., :, None]], axis=-1)
    bottom = jnp.broadcast_to(jnp.array([0., 0., 0., 1.], jnp.float32),
                              batch + (1, 4))
    return jnp.concatenate([top, bottom], axis=-2)


if __name__ == "__main__":
    N_RES, N_ATOM, N_BLOCK, NO_BINS, N_CLASS, N_SEQ = 8, 4, 2, 16, 8, 1

    CONFIG = {
        "distogram": {"weight": 0.3, "min_bin": 2.0, "max_bin": 22.0,
                      "no_bins": NO_BINS, "eps": 1e-6},
        "fape": {"weight": 1.0,
                 "backbone": {"clamp_distance": 10.0,
                              "loss_unit_distance": 10.0, "eps": 1e-4}},
        "masked_msa": {"weight": 2.0, "num_classes": N_CLASS, "eps": 1e-8},
    }

    key = jax.random.PRNGKey(0)
    ks = jax.random.split(key, 14)
    restype = jax.random.randint(ks[0], (N_RES,), 0, 4)
    all_atom_positions = 5.0 * jax.random.normal(ks[1], (N_RES, N_ATOM, 3), jnp.float32)
    all_atom_mask = (jax.random.uniform(ks[2], (N_RES, N_ATOM)) > 0.1).astype(jnp.float32)
    backbone_rigid_mask = (jax.random.uniform(ks[3], (N_RES,)) > 0.1).astype(jnp.float32)
    backbone_rigid_tensor = make_4x4(jax.random.normal(ks[4], (N_RES, 4)),
                                     5.0 * jax.random.normal(ks[5], (N_RES, 3)))
    traj = make_4x4(jax.random.normal(ks[6], (N_BLOCK, N_RES, 4)),
                    5.0 * jax.random.normal(ks[7], (N_BLOCK, N_RES, 3)))
    pred_atom_positions = 5.0 * jax.random.normal(ks[8], (N_BLOCK, N_RES, N_ATOM, 3), jnp.float32)
    distogram_logits = jax.random.normal(ks[9], (N_RES, N_RES, NO_BINS), jnp.float32)
    masked_msa_logits = jax.random.normal(ks[10], (N_SEQ, N_RES, N_CLASS), jnp.float32)
    true_msa = jax.random.randint(ks[11], (N_SEQ, N_RES), 0, N_CLASS)
    bert_mask = (jax.random.uniform(ks[12], (N_SEQ, N_RES)) > 0.5).astype(jnp.float32)
    glycos_N, glycos_N_mask = glycos_N_fn(restype, all_atom_positions, all_atom_mask)

    out = {
        "distogram_logits": distogram_logits,
        "masked_msa_logits": masked_msa_logits,
        "sm": {"frames": traj, "positions": pred_atom_positions},
    }
    batch = {
        "restype": restype,
        "backbone_rigid_tensor": backbone_rigid_tensor,
        "backbone_rigid_mask": backbone_rigid_mask,
        "all_atom_positions": all_atom_positions,
        "all_atom_mask": all_atom_mask,
        "glycos_N": glycos_N,
        "glycos_N_mask": glycos_N_mask,
        "true_msa": true_msa,
        "bert_mask": bert_mask,
        "seq_length": jnp.array([float(N_RES)], jnp.float32),
    }

    cum_loss, losses = structure_loss(out, batch, CONFIG)
    cum_loss = jax.block_until_ready(cum_loss)

    ref = jax.block_until_ready(ref_structure_loss(out, batch, CONFIG))
    np.testing.assert_allclose(float(cum_loss), float(ref), rtol=2e-3, atol=2e-3)

    print("KERNEL_OK")
</pallas_src>

<mosaic_0001>
module attributes {stable_mosaic.version = 11 : i64} {
  func.func @_distogram_kernel(%arg0: i32, %arg1: memref<8x8x16xf32, #tpu.memory_space<vmem>>, %arg2: memref<8x3xf32, #tpu.memory_space<vmem>>, %arg3: memref<3x8xf32, #tpu.memory_space<vmem>>, %arg4: memref<8x1xf32, #tpu.memory_space<vmem>>, %arg5: memref<1x8xf32, #tpu.memory_space<vmem>>, %arg6: memref<8x128xf32, #tpu.memory_space<vmem>>) attributes {dimension_semantics = [#tpu.dimension_semantics<parallel>], iteration_bounds = array<i64: 1>, scalar_prefetch = 0 : i64, scratch_operands = 0 : i64, tpu.core_type = #tpu.core_type<tc>, window_params = [{transform_indices = @transform_0, window_bounds = array<i64: 8, 8, 16>}, {transform_indices = @transform_1, window_bounds = array<i64: 8, 3>}, {pipeline_mode = #tpu.pipeline_mode<synchronous>, transform_indices = @transform_2, window_bounds = array<i64: 3, 8>}, {transform_indices = @transform_3, window_bounds = array<i64: 8, 1>}, {pipeline_mode = #tpu.pipeline_mode<synchronous>, transform_indices = @transform_4, window_bounds = array<i64: 1, 8>}, {transform_indices = @transform_5, window_bounds = array<i64: 8, 128>}]} {
    %c0 = arith.constant 0 : index
    %c0_0 = arith.constant 0 : index
    %0 = vector.load %arg2[%c0, %c0_0] : memref<8x3xf32, #tpu.memory_space<vmem>>, vector<8x3xf32>
    %c0_1 = arith.constant 0 : index
    %c0_2 = arith.constant 0 : index
    %1 = vector.load %arg3[%c0_1, %c0_2] : memref<3x8xf32, #tpu.memory_space<vmem>>, vector<3x8xf32>
    %cst = arith.constant 0.000000e+00 : f32
    %2 = vector.broadcast %cst : f32 to vector<8x8xf32>
    %3 = vector.extract_strided_slice %0 {offsets = [0, 0], sizes = [8, 1], strides = [1, 1]} : vector<8x3xf32> to vector<8x1xf32>
    %4 = vector.extract_strided_slice %1 {offsets = [0, 0], sizes = [1, 8], strides = [1, 1]} : vector<3x8xf32> to vector<1x8xf32>
    %5 = vector.broadcast %3 : vector<8x1xf32> to vector<8x8xf32>
    %6 = vector.broadcast %4 : vector<1x8xf32> to vector<8x8xf32>
    %7 = arith.subf %5, %6 : vector<8x8xf32>
    %8 = arith.mulf %7, %7 : vector<8x8xf32>
    %9 = arith.addf %2, %8 : vector<8x8xf32>
    %10 = vector.extract_strided_slice %0 {offsets = [0, 1], sizes = [8, 1], strides = [1, 1]} : vector<8x3xf32> to vector<8x1xf32>
    %11 = vector.extract_strided_slice %1 {offsets = [1, 0], sizes = [1, 8], strides = [1, 1]} : vector<3x8xf32> to vector<1x8xf32>
    %12 = vector.broadcast %10 : vector<8x1xf32> to vector<8x8xf32>
    %13 = vector.broadcast %11 : vector<1x8xf32> to vector<8x8xf32>
    %14 = arith.subf %12, %13 : vector<8x8xf32>
    %15 = arith.mulf %14, %14 : vector<8x8xf32>
    %16 = arith.addf %9, %15 : vector<8x8xf32>
    %17 = vector.extract_strided_slice %0 {offsets = [0, 2], sizes = [8, 1], strides = [1, 1]} : vector<8x3xf32> to vector<8x1xf32>
    %18 = vector.extract_strided_slice %1 {offsets = [2, 0], sizes = [1, 8], strides = [1, 1]} : vector<3x8xf32> to vector<1x8xf32>
    %19 = vector.broadcast %17 : vector<8x1xf32> to vector<8x8xf32>
    %20 = vector.broadcast %18 : vector<1x8xf32> to vector<8x8xf32>
    %21 = arith.subf %19, %20 : vector<8x8xf32>
    %22 = arith.mulf %21, %21 : vector<8x8xf32>
    %23 = arith.addf %16, %22 : vector<8x8xf32>
    %c0_i32 = arith.constant 0 : i32
    %24 = vector.broadcast %c0_i32 : i32 to vector<8x8xi32>
    %cst_3 = arith.constant 4.000000e+00 : f32
    %25 = vector.broadcast %cst_3 : f32 to vector<8x8xf32>
    %26 = arith.cmpf ogt, %23, %25 : vector<8x8xf32>
    %27 = arith.extui %26 : vector<8x8xi1> to vector<8x8xi32>
    %28 = arith.addi %24, %27 : vector<8x8xi32>
    %cst_4 = arith.constant 11.7551022 : f32
    %29 = vector.broadcast %cst_4 : f32 to vector<8x8xf32>
    %30 = arith.cmpf ogt, %23, %29 : vector<8x8xf32>
    %31 = arith.extui %30 : vector<8x8xi1> to vector<8x8xi32>
    %32 = arith.addi %28, %31 : vector<8x8xi32>
    %cst_5 = arith.constant 23.5918369 : f32
    %33 = vector.broadcast %cst_5 : f32 to vector<8x8xf32>
    %34 = arith.cmpf ogt, %23, %33 : vector<8x8xf32>
    %35 = arith.extui %34 : vector<8x8xi1> to vector<8x8xi32>
    %36 = arith.addi %32, %35 : vector<8x8xi32>
    %cst_6 = arith.constant 3.951020e+01 : f32
    %37 = vector.broadcast %cst_6 : f32 to vector<8x8xf32>
    %38 = arith.cmpf ogt, %23, %37 : vector<8x8xf32>
    %39 = arith.extui %38 : vector<8x8xi1> to vector<8x8xi32>
    %40 = arith.addi %36, %39 : vector<8x8xi32>
    %cst_7 = arith.constant 59.5102043 : f32
    %41 = vector.broadcast %cst_7 : f32 to vector<8x8xf32>
    %42 = arith.cmpf ogt, %23, %41 : vector<8x8xf32>
    %43 = arith.extui %42 : vector<8x8xi1> to vector<8x8xi32>
    %44 = arith.addi %40, %43 : vector<8x8xi32>
    %cst_8 = arith.constant 83.5918426 : f32
    %45 = vector.broadcast %cst_8 : f32 to vector<8x8xf32>
    %46 = arith.cmpf ogt, %23, %45 : vector<8x8xf32>
    %47 = arith.extui %46 : vector<8x8xi1> to vector<8x8xi32>
    %48 = arith.addi %44, %47 : vector<8x8xi32>
    %cst_9 = arith.constant 111.755096 : f32
    %49 = vector.broadcast %cst_9 : f32 to vector<8x8xf32>
    %50 = arith.cmpf ogt, %23, %49 : vector<8x8xf32>
    %51 = arith.extui %50 : vector<8x8xi1> to vector<8x8xi32>
    %52 = arith.addi %48, %51 : vector<8x8xi32>
    %cst_10 = arith.constant 1.440000e+02 : f32
    %53 = vector.broadcast %cst_10 : f32 to vector<8x8xf32>
    %54 = arith.cmpf ogt, %23, %53 : vector<8x8xf32>
    %55 = arith.extui %54 : vector<8x8xi1> to vector<8x8xi32>
    %56 = arith.addi %52, %55 : vector<8x8xi32>
    %cst_11 = arith.constant 180.326538 : f32
    %57 = vector.broadcast %cst_11 : f32 to vector<8x8xf32>
    %58 = arith.cmpf ogt, %23, %57 : vector<8x8xf32>
    %59 = arith.extui %58 : vector<8x8xi1> to vector<8x8xi32>
    %60 = arith.addi %56, %59 : vector<8x8xi32>
    %cst_12 = arith.constant 220.73468 : f32
    %61 = vector.broadcast %cst_12 : f32 to vector<8x8xf32>
    %62 = arith.cmpf ogt, %23, %61 : vector<8x8xf32>
    %63 = arith.extui %62 : vector<8x8xi1> to vector<8x8xi32>
    %64 = arith.addi %60, %63 : vector<8x8xi32>
    %cst_13 = arith.constant 265.224518 : f32
    %65 = vector.broadcast %cst_13 : f32 to vector<8x8xf32>
    %66 = arith.cmpf ogt, %23, %65 : vector<8x8xf32>
    %67 = arith.extui %66 : vector<8x8xi1> to vector<8x8xi32>
    %68 = arith.addi %64, %67 : vector<8x8xi32>
    %cst_14 = arith.constant 313.795898 : f32
    %69 = vector.broadcast %cst_14 : f32 to vector<8x8xf32>
    %70 = arith.cmpf ogt, %23, %69 : vector<8x8xf32>
    %71 = arith.extui %70 : vector<8x8xi1> to vector<8x8xi32>
    %72 = arith.addi %68, %71 : vector<8x8xi32>
    %cst_15 = arith.constant 366.448944 : f32
    %73 = vector.broadcast %cst_15 : f32 to vector<8x8xf32>
    %74 = arith.cmpf ogt, %23, %73 : vector<8x8xf32>
    %75 = arith.extui %74 : vector<8x8xi1> to vector<8x8xi32>
    %76 = arith.addi %72, %75 : vector<8x8xi32>
    %cst_16 = arith.constant 423.183655 : f32
    %77 = vector.broadcast %cst_16 : f32 to vector<8x8xf32>
    %78 = arith.cmpf ogt, %23, %77 : vector<8x8xf32>
    %79 = arith.extui %78 : vector<8x8xi1> to vector<8x8xi32>
    %80 = arith.addi %76, %79 : vector<8x8xi32>
    %cst_17 = arith.constant 4.840000e+02 : f32
    %81 = vector.broadcast %cst_17 : f32 to vector<8x8xf32>
    %82 = arith.cmpf ogt, %23, %81 : vector<8x8xf32>
    %83 = arith.extui %82 : vector<8x8xi1> to vector<8x8xi32>
    %84 = arith.addi %80, %83 : vector<8x8xi32>
    %c0_18 = arith.constant 0 : index
    %c0_19 = arith.constant 0 : index
    %c0_20 = arith.constant 0 : index
    %85 = vector.load %arg1[%c0_18, %c0_19, %c0_20] : memref<8x8x16xf32, #tpu.memory_space<vmem>>, vector<8x8x16xf32>
    %cst_21 = arith.constant dense<0xFF800000> : vector<8x8xf32>
    %86 = vector.multi_reduction <maximumf>, %85, %cst_21 [2] : vector<8x8x16xf32> to vector<8x8xf32>
    %87 = vector.shape_cast %86 : vector<8x8xf32> to vector<8x8x1xf32>
    %88 = vector.broadcast %87 : vector<8x8x1xf32> to vector<8x8x16xf32>
    %89 = arith.subf %85, %88 : vector<8x8x16xf32>
    %90 = math.exp %89 : vector<8x8x16xf32>
    %cst_22 = arith.constant dense<0.000000e+00> : vector<8x8xf32>
    %91 = vector.multi_reduction <add>, %90, %cst_22 [2] : vector<8x8x16xf32> to vector<8x8xf32>
    %92 = math.log %91 : vector<8x8xf32>
    %93 = vector.shape_cast %87 : vector<8x8x1xf32> to vector<8x8xf32>
    %94 = arith.addf %92, %93 : vector<8x8xf32>
    %95 = tpu.iota {dimensions = array<i32: 2>} : vector<8x8x16xi32>
    %96 = vector.shape_cast %84 : vector<8x8xi32> to vector<8x8x1xi32>
    %97 = vector.broadcast %96 : vector<8x8x1xi32> to vector<8x8x16xi32>
    %98 = arith.cmpi eq, %95, %97 : vector<8x8x16xi32>
    %cst_23 = arith.constant 0.000000e+00 : f32
    %99 = vector.broadcast %cst_23 : f32 to vector<8x8x16xf32>
    %100 = arith.select %98, %85, %99 : vector<8x8x16xi1>, vector<8x8x16xf32>
    %cst_24 = arith.constant dense<0.000000e+00> : vector<8x8xf32>
    %101 = vector.multi_reduction <add>, %100, %cst_24 [2] : vector<8x8x16xf32> to vector<8x8xf32>
    %102 = arith.subf %94, %101 : vector<8x8xf32>
    %c0_25 = arith.constant 0 : index
    %c0_26 = arith.constant 0 : index
    %103 = vector.load %arg4[%c0_25, %c0_26] : memref<8x1xf32, #tpu.memory_space<vmem>>, vector<8x1xf32>
    %c0_27 = arith.constant 0 : index
    %c0_28 = arith.constant 0 : index
    %104 = vector.load %arg5[%c0_27, %c0_28] : memref<1x8xf32, #tpu.memory_space<vmem>>, vector<1x8xf32>
    %105 = vector.broadcast %103 : vector<8x1xf32> to vector<8x8xf32>
    %106 = vector.broadcast %104 : vector<1x8xf32> to vector<8x8xf32>
    %107 = arith.mulf %105, %106 : vector<8x8xf32>
    %108 = tpu.iota {dimensions = array<i32: 0>} : vector<8x8xi32>
    %c8_i32 = arith.constant 8 : i32
    %109 = arith.muli %arg0, %c8_i32 : i32
    %110 = vector.broadcast %109 : i32 to vector<8x8xi32>
    %111 = arith.addi %108, %110 : vector<8x8xi32>
    %c8_i32_29 = arith.constant 8 : i32
    %112 = vector.broadcast %c8_i32_29 : i32 to vector<8x8xi32>
    %113 = arith.cmpi slt, %111, %112 : vector<8x8xi32>
    %114 = arith.mulf %102, %107 : vector<8x8xf32>
    %cst_30 = arith.constant 0.000000e+00 : f32
    %115 = vector.broadcast %cst_30 : f32 to vector<8x8xf32>
    %116 = arith.select %113, %114, %115 : vector<8x8xi1>, vector<8x8xf32>
    %117 = vector.shape_cast %116 : vector<8x8xf32> to vector<1x8x8xf32>
    %cst_31 = arith.constant dense<0.000000e+00> : vector<1xf32>
    %118 = vector.multi_reduction <add>, %117, %cst_31 [1, 2] : vector<1x8x8xf32> to vector<1xf32>
    %119 = vector.shape_cast %118 : vector<1xf32> to vector<1x1x1xf32>
    %120 = vector.extract %119[0, 0, 0] : f32 from vector<1x1x1xf32>
    %121 = vector.broadcast %120 : f32 to vector<1x1xf32>
    %122 = vector.shape_cast %121 : vector<1x1xf32> to vector<1x1xf32>
    %123 = vector.broadcast %122 : vector<1x1xf32> to vector<8x128xf32>
    %c0_32 = arith.constant 0 : index
    %c0_33 = arith.constant 0 : index
    %124 = vector.load %arg6[%c0_32, %c0_33] : memref<8x128xf32, #tpu.memory_space<vmem>>, vector<8x128xf32>
    tpu.vector_store %arg6[%c0_32, %c0_33], %123 {strides = array<i32>} : memref<8x128xf32, #tpu.memory_space<vmem>>, vector<8x128xf32>,
    return
  }
  func.func @transform_0(%arg0: i32) -> (i32, i32, i32) {
    %c0_i32 = arith.constant 0 : i32
    %c0_i32_0 = arith.constant 0 : i32
    %c0_i32_1 = arith.constant 0 : i32
    return %arg0, %c0_i32, %c0_i32_0 : i32, i32, i32
  }
  func.func @transform_1(%arg0: i32) -> (i32, i32) {
    %c0_i32 = arith.constant 0 : i32
    %c0_i32_0 = arith.constant 0 : i32
    return %arg0, %c0_i32 : i32, i32
  }
  func.func @transform_2(%arg0: i32) -> (i32, i32) {
    %c0_i32 = arith.constant 0 : i32
    %c0_i32_0 = arith.constant 0 : i32
    %c0_i32_1 = arith.constant 0 : i32
    return %c0_i32, %c0_i32_0 : i32, i32
  }
  func.func @transform_3(%arg0: i32) -> (i32, i32) {
    %c0_i32 = arith.constant 0 : i32
    %c0_i32_0 = arith.constant 0 : i32
    return %arg0, %c0_i32 : i32, i32
  }
  func.func @transform_4(%arg0: i32) -> (i32, i32) {
    %c0_i32 = arith.constant 0 : i32
    %c0_i32_0 = arith.constant 0 : i32
    %c0_i32_1 = arith.constant 0 : i32
    return %c0_i32, %c0_i32_0 : i32, i32
  }
  func.func @transform_5(%arg0: i32) -> (i32, i32) {
    %c0_i32 = arith.constant 0 : i32
    %c0_i32_0 = arith.constant 0 : i32
    return %arg0, %c0_i32 : i32, i32
  }
}

</mosaic_0001>

<llo_original>
// kernel: tpu_custom_call.1
$region0: #{tpu_custom_call.1}
  #allocation0 [shape = 'u32[]', space=smem, size = 0x4, offset = 0x4, fixed_abs, tag = 'smem constant byte address 0x4 - core index']
  #allocation1 [shape = 'u32[144,128]{1,0:T(1,128)}', space=vmem, size = 0x12000, scoped, tag = 'internal scratch']
  %s0 = inlined_call_operand.hbm [shape: f32[8,8,16], index: 0, kind: input, shape index: {}]
  %s1 = inlined_call_operand.vmem [shape: f32[8,3], index: 1, kind: input, shape index: {}]
  %s2 = inlined_call_operand.vmem [shape: f32[3,8], index: 2, kind: input, shape index: {}]
  %s3 = inlined_call_operand.vmem [shape: f32[8,1], index: 3, kind: input, shape index: {}]
  %s4 = inlined_call_operand.vmem [shape: f32[1,8], index: 4, kind: input, shape index: {}]
  %s5 = inlined_call_operand.hbm [shape: f32[8,128], index: 5, kind: output, shape index: {}]
  %s6 = sld [smem:[#allocation0]]
  $region34: #{tpu_custom_call.1} parent=0
    _
  %s8 = ssub.s32 1, %s6
  %s9 = scalar_select 0, %s8, %s6
  $region1: #{tpu_custom_call.1} parent=0
    #allocation2 [shape = 'u8[32768]{0}', space=vmem, size = 0x8000, scoped, tag = 'input window, operand 0, single buffered']
    #allocation3 [shape = 's32[1]{0}', space=sflag, size = 0x4, scoped, tag = 'scoped memory for tpu_custom_call.1']
    #allocation4 [shape = 's32[1]{0}', space=sflag, size = 0x4, scoped, tag = 'scoped memory for tpu_custom_call.1']
    #allocation5 [shape = 'u8[4096]{0}', space=vmem, size = 0x1000, scoped, tag = 'output window, operand 0, single buffered']
    %10 = vsyncpa [#allocation3], 0
    %11 = vsyncpa [#allocation4], 0
    // Predicated region
    $region2: #{tpu_custom_call.1} parent=1 // pred_check
      _
    $region3: #{tpu_custom_call.1} parent=1 // pred_check_branch
      %13 = sbr.rel (0) target = $region5
    $region4: #{tpu_custom_call.1} parent=1 // pred_region
      %s15 = ssub.s32 1024, 1024
      %16 = vsyncadd [#allocation3], %s15
      %s17 = sshll.u32 [#allocation2], 4
      %s18 = int_to_ptr.vmem [resolvable:$true] %s17
      %23 = dma.hbm_to_vmem [thread:$0]  %s0, 1024, %s18, [#allocation3], 128, 128, 8
    $region5: #{tpu_custom_call.1} parent=1 // pred_fallthru
      _
    // Predicated region
    $region6: #{tpu_custom_call.1} parent=1 // pred_check
      _
    $region7: #{tpu_custom_call.1} parent=1 // pred_check_branch
      %25 = sbr.rel (0) target = $region9
    $region8: #{tpu_custom_call.1} parent=1 // pred_region
      _
    $region9: #{tpu_custom_call.1} parent=1 // pred_fallthru
      _
    // Predicated region
    $region10: #{tpu_custom_call.1} parent=1 // pred_check
      _
    $region11: #{tpu_custom_call.1} parent=1 // pred_check_branch
      %27 = sbr.rel (0) target = $region13
    $region12: #{tpu_custom_call.1} parent=1 // pred_region
      _
    $region13: #{tpu_custom_call.1} parent=1 // pred_fallthru
      _
    // Predicated region
    $region14: #{tpu_custom_call.1} parent=1 // pred_check
      _
    $region15: #{tpu_custom_call.1} parent=1 // pred_check_branch
      %29 = sbr.rel (0) target = $region17
    $region16: #{tpu_custom_call.1} parent=1 // pred_region
      _
    $region17: #{tpu_custom_call.1} parent=1 // pred_fallthru
      _
    // Predicated region
    $region18: #{tpu_custom_call.1} parent=1 // pred_check
      _
    $region19: #{tpu_custom_call.1} parent=1 // pred_check_branch
      %31 = sbr.rel (0) target = $region21
    $region20: #{tpu_custom_call.1} parent=1 // pred_region
      _
    $region21: #{tpu_custom_call.1} parent=1 // pred_fallthru
      _
    // Predicated region
    $region22: #{tpu_custom_call.1} parent=1 // pred_check
      _
    $region23: #{tpu_custom_call.1} parent=1 // pred_check_branch
      %33 = sbr.rel (0) target = $region25
    $region24: #{tpu_custom_call.1} parent=1 // pred_region
      %34 = dma.done [#allocation3], 1024
    $region25: #{tpu_custom_call.1} parent=1 // pred_fallthru
      _
    %v35 = vld [vmem:[%s1] sm:$0xff]
    %v36 = vld [vmem:[%s2] sm:$0x7]
    %38 = vset.pattern.permute.xlu0 0
    %39 = vperm.xlu0 %38, %v35
    %v40 = vpop.permute.xlu0 %39
    %v42 = vlaneseq
    %v43 = vshrl.u32 %v42, 7
    %v44 = vsub.s32 0, %v43
    %v45 = vrot.slane %v36, %v44
    %v46 = vsub.f32 %v40, %v45
    %v47 = vmul.f32 %v46, %v46
    %v48 = vadd.f32 %v47, 0.0
    %49 = vset.pattern.permute.xlu0 1
    %50 = vperm.xlu0 %49, %v35
    %v51 = vpop.permute.xlu0 %50
    %v53 = vlaneseq
    %v54 = vshrl.u32 %v53, 7
    %v55 = vsub.s32 1, %v54
    %v56 = vrot.slane %v36, %v55
    %v57 = vsub.f32 %v51, %v56
    %v58 = vmul.f32 %v57, %v57
    %v59 = vadd.f32 %v48, %v58
    %60 = vset.pattern.permute.xlu0 2
    %61 = vperm.xlu0 %60, %v35
    %v62 = vpop.permute.xlu0 %61
    %v64 = vlaneseq
    %v65 = vshrl.u32 %v64, 7
    %v66 = vsub.s32 2, %v65
    %v67 = vrot.slane %v36, %v66
    %v68 = vsub.f32 %v62, %v67
    %v69 = vmul.f32 %v68, %v68
    %v70 = vadd.f32 %v59, %v69
    %vm71 = vcmp.gt.f32.partialorder %v70, 4.0
    %v72 = vsel %vm71, 1, 0
    %vm73 = vcmp.gt.f32.partialorder %v70, 11.755102
    %v74 = vsel %vm73, 1, 0
    %v75 = vadd.s32 %v72, %v74
    %vm76 = vcmp.gt.f32.partialorder %v70, 23.591837
    %v77 = vsel %vm76, 1, 0
    %v78 = vadd.s32 %v75, %v77
    %vm79 = vcmp.gt.f32.partialorder %v70, 39.5102
    %v80 = vsel %vm79, 1, 0
    %v81 = vadd.s32 %v78, %v80
    %vm82 = vcmp.gt.f32.partialorder %v70, 59.510204
    %v83 = vsel %vm82, 1, 0
    %v84 = vadd.s32 %v81, %v83
    %vm85 = vcmp.gt.f32.partialorder %v70, 83.59184
    %v86 = vsel %vm85, 1, 0
    %v87 = vadd.s32 %v84, %v86
    %vm88 = vcmp.gt.f32.partialorder %v70, 111.7551
    %v89 = vsel %vm88, 1, 0
    %v90 = vadd.s32 %v87, %v89
    %vm91 = vcmp.gt.f32.partialorder %v70, 144.0
    %v92 = vsel %vm91, 1, 0
    %v93 = vadd.s32 %v90, %v92
    %vm94 = vcmp.gt.f32.partialorder %v70, 180.32654
    %v95 = vsel %vm94, 1, 0
    %v96 = vadd.s32 %v93, %v95
    %vm97 = vcmp.gt.f32.partialorder %v70, 220.73468
    %v98 = vsel %vm97, 1, 0
    %v99 = vadd.s32 %v96, %v98
    %vm100 = vcmp.gt.f32.partialorder %v70, 265.22452
    %v101 = vsel %vm100, 1, 0
    %v102 = vadd.s32 %v99, %v101
    %vm103 = vcmp.gt.f32.partialorder %v70, 313.7959
    %v104 = vsel %vm103, 1, 0
    %v105 = vadd.s32 %v102, %v104
    %vm106 = vcmp.gt.f32.partialorder %v70, 366.44894
    %v107 = vsel %vm106, 1, 0
    %v108 = vadd.s32 %v105, %v107
    %vm109 = vcmp.gt.f32.partialorder %v70, 423.18365
    %v110 = vsel %vm109, 1, 0
    %v111 = vadd.s32 %v108, %v110
    %vm112 = vcmp.gt.f32.partialorder %v70, 484.0
    %v113 = vsel %vm112, 1, 0
    %v114 = vadd.s32 %v111, %v113
    %v115 = vld [vmem:[#allocation2] sm:$0xff]
    %v116 = vld [vmem:[#allocation2 + $0x8] sm:$0xff]
    %v117 = vld [vmem:[#allocation2 + $0x10] sm:$0xff]
    %v118 = vld [vmem:[#allocation2 + $0x18] sm:$0xff]
    %v119 = vld [vmem:[#allocation2 + $0x20] sm:$0xff]
    %v120 = vld [vmem:[#allocation2 + $0x28] sm:$0xff]
    %v121 = vld [vmem:[#allocation2 + $0x30] sm:$0xff]
    %v122 = vld [vmem:[#allocation2 + $0x38] sm:$0xff]
    %vm123 = vcmask 130048
    %v124 = vsel %vm123, %v115, -inf
    %125 = vmax.xlane.f32.xlu0 %v124
    %v126 = vpop.xlane.xlu0 %125
    %v127 = vsel %vm123, %v116, -inf
    %128 = vmax.xlane.f32.xlu0 %v127
    %v129 = vpop.xlane.xlu0 %128
    %v130 = vsel %vm123, %v117, -inf
    %131 = vmax.xlane.f32.xlu0 %v130
    %v132 = vpop.xlane.xlu0 %131
    %v133 = vsel %vm123, %v118, -inf
    %134 = vmax.xlane.f32.xlu0 %v133
    %v135 = vpop.xlane.xlu0 %134
    %v136 = vsel %vm123, %v119, -inf
    %137 = vmax.xlane.f32.xlu0 %v136
    %v138 = vpop.xlane.xlu0 %137
    %v139 = vsel %vm123, %v120, -inf
    %140 = vmax.xlane.f32.xlu0 %v139
    %v141 = vpop.xlane.xlu0 %140
    %v142 = vsel %vm123, %v121, -inf
    %143 = vmax.xlane.f32.xlu0 %v142
    %v144 = vpop.xlane.xlu0 %143
    %v145 = vsel %vm123, %v122, -inf
    %146 = vmax.xlane.f32.xlu0 %v145
    %v147 = vpop.xlane.xlu0 %146
    %v148 = vsub.f32 %v115, %v126
    %v149 = vsub.f32 %v116, %v129
    %v150 = vsub.f32 %v117, %v132
    %v151 = vsub.f32 %v118, %v135
    %v152 = vsub.f32 %v119, %v138
    %v153 = vsub.f32 %v120, %v141
    %v154 = vsub.f32 %v121, %v144
    %v155 = vsub.f32 %v122, %v147
    %v156 = vmul.f32 %v148, 1.442695
    %v157 = vpow.pop %v156
    %v158 = vmul.f32 %v149, 1.442695
    %v159 = vpow.pop %v158
    %v160 = vmul.f32 %v150, 1.442695
    %v161 = vpow.pop %v160
    %v162 = vmul.f32 %v151, 1.442695
    %v163 = vpow.pop %v162
    %v164 = vmul.f32 %v152, 1.442695
    %v165 = vpow.pop %v164
    %v166 = vmul.f32 %v153, 1.442695
    %v167 = vpow.pop %v166
    %v168 = vmul.f32 %v154, 1.442695
    %v169 = vpow.pop %v168
    %v170 = vmul.f32 %v155, 1.442695
    %v171 = vpow.pop %v170
    %v172 = vsel %vm123, %v157, 0.0
    %173 = vadd.xlane.f32.xlu0 %v172
    %v174 = vpop.xlane.xlu0 %173
    %v175 = vsel %vm123, %v159, 0.0
    %176 = vadd.xlane.f32.xlu0 %v175
    %v177 = vpop.xlane.xlu0 %176
    %v178 = vsel %vm123, %v161, 0.0
    %179 = vadd.xlane.f32.xlu0 %v178
    %v180 = vpop.xlane.xlu0 %179
    %v181 = vsel %vm123, %v163, 0.0
    %182 = vadd.xlane.f32.xlu0 %v181
    %v183 = vpop.xlane.xlu0 %182
    %v184 = vsel %vm123, %v165, 0.0
    %185 = vadd.xlane.f32.xlu0 %v184
    %v186 = vpop.xlane.xlu0 %185
    %v187 = vsel %vm123, %v167, 0.0
    %188 = vadd.xlane.f32.xlu0 %v187
    %v189 = vpop.xlane.xlu0 %188
    %v190 = vsel %vm123, %v169, 0.0
    %191 = vadd.xlane.f32.xlu0 %v190
    %v192 = vpop.xlane.xlu0 %191
    %v193 = vsel %vm123, %v171, 0.0
    %194 = vadd.xlane.f32.xlu0 %v193
    %v195 = vpop.xlane.xlu0 %194
    %v196 = vlog2.pop %v174
    %v197 = vmul.f32 %v196, 0.6931472
    %v198 = vlog2.pop %v177
    %v199 = vmul.f32 %v198, 0.6931472
    %v200 = vlog2.pop %v180
    %v201 = vmul.f32 %v200, 0.6931472
    %v202 = vlog2.pop %v183
    %v203 = vmul.f32 %v202, 0.6931472
    %v204 = vlog2.pop %v186
    %v205 = vmul.f32 %v204, 0.6931472
    %v206 = vlog2.pop %v189
    %v207 = vmul.f32 %v206, 0.6931472
    %v208 = vlog2.pop %v192
    %v209 = vmul.f32 %v208, 0.6931472
    %v210 = vlog2.pop %v195
    %v211 = vmul.f32 %v210, 0.6931472
    %v212 = vadd.f32 %v197, %v126
    %v213 = vadd.f32 %v199, %v129
    %v214 = vadd.f32 %v201, %v132
    %v215 = vadd.f32 %v203, %v135
    %v216 = vadd.f32 %v205, %v138
    %v217 = vadd.f32 %v207, %v141
    %v218 = vadd.f32 %v209, %v144
    %v219 = vadd.f32 %v211, %v147
    %v220 = vlaneseq
    %v221 = vand.u32 %v220, 127
    %v222 = vlaneseq
    %v223 = vshrl.u32 %v222, 7
    %v224 = vsub.s32 0, %v223
    %v225 = vrot.slane %v114, %v224
    %227 = vbcast.lane.b32.xlu0 %v225, 256
    %v228 = vpop.permute.xlu0 %227
    %v229 = vlaneseq
    %v230 = vshrl.u32 %v229, 7
    %v231 = vsub.s32 1, %v230
    %v232 = vrot.slane %v114, %v231
    %234 = vbcast.lane.b32.xlu0 %v232, 256
    %v235 = vpop.permute.xlu0 %234
    %v236 = vlaneseq
    %v237 = vshrl.u32 %v236, 7
    %v238 = vsub.s32 2, %v237
    %v239 = vrot.slane %v114, %v238
    %241 = vbcast.lane.b32.xlu0 %v239, 256
    %v242 = vpop.permute.xlu0 %241
    %v243 = vlaneseq
    %v244 = vshrl.u32 %v243, 7
    %v245 = vsub.s32 3, %v244
    %v246 = vrot.slane %v114, %v245
    %248 = vbcast.lane.b32.xlu0 %v246, 256
    %v249 = vpop.permute.xlu0 %248
    %v250 = vlaneseq
    %v251 = vshrl.u32 %v250, 7
    %v252 = vsub.s32 4, %v251
    %v253 = vrot.slane %v114, %v252
    %255 = vbcast.lane.b32.xlu0 %v253, 256
    %v256 = vpop.permute.xlu0 %255
    %v257 = vlaneseq
    %v258 = vshrl.u32 %v257, 7
    %v259 = vsub.s32 5, %v258
    %v260 = vrot.slane %v114, %v259
    %262 = vbcast.lane.b32.xlu0 %v260, 256
    %v263 = vpop.permute.xlu0 %262
    %v264 = vlaneseq
    %v265 = vshrl.u32 %v264, 7
    %v266 = vsub.s32 6, %v265
    %v267 = vrot.slane %v114, %v266
    %269 = vbcast.lane.b32.xlu0 %v267, 256
    %v270 = vpop.permute.xlu0 %269
    %v271 = vlaneseq
    %v272 = vshrl.u32 %v271, 7
    %v273 = vsub.s32 7, %v272
    %v274 = vrot.slane %v114, %v273
    %276 = vbcast.lane.b32.xlu0 %v274, 256
    %v277 = vpop.permute.xlu0 %276
    %vm278 = vcmp.eq.s32.totalorder %v221, %v228
    %vm279 = vcmp.eq.s32.totalorder %v221, %v235
    %vm280 = vcmp.eq.s32.totalorder %v221, %v242
    %vm281 = vcmp.eq.s32.totalorder %v221, %v249
    %vm282 = vcmp.eq.s32.totalorder %v221, %v256
    %vm283 = vcmp.eq.s32.totalorder %v221, %v263
    %vm284 = vcmp.eq.s32.totalorder %v221, %v270
    %vm285 = vcmp.eq.s32.totalorder %v221, %v277
    %v286 = vsel %vm278, %v115, 0.0
    %v287 = vsel %vm279, %v116, 0.0
    %v288 = vsel %vm280, %v117, 0.0
    %v289 = vsel %vm281, %v118, 0.0
    %v290 = vsel %vm282, %v119, 0.0
    %v291 = vsel %vm283, %v120, 0.0
    %v292 = vsel %vm284, %v121, 0.0
    %v293 = vsel %vm285, %v122, 0.0
    %v294 = vsel %vm123, %v286, 0.0
    %295 = vadd.xlane.f32.xlu0 %v294
    %v296 = vpop.xlane.xlu0 %295
    %v297 = vsel %vm123, %v287, 0.0
    %298 = vadd.xlane.f32.xlu0 %v297
    %v299 = vpop.xlane.xlu0 %298
    %v300 = vsel %vm123, %v288, 0.0
    %301 = vadd.xlane.f32.xlu0 %v300
    %v302 = vpop.xlane.xlu0 %301
    %v303 = vsel %vm123, %v289, 0.0
    %304 = vadd.xlane.f32.xlu0 %v303
    %v305 = vpop.xlane.xlu0 %304
    %v306 = vsel %vm123, %v290, 0.0
    %307 = vadd.xlane.f32.xlu0 %v306
    %v308 = vpop.xlane.xlu0 %307
    %v309 = vsel %vm123, %v291, 0.0
    %310 = vadd.xlane.f32.xlu0 %v309
    %v311 = vpop.xlane.xlu0 %310
    %v312 = vsel %vm123, %v292, 0.0
    %313 = vadd.xlane.f32.xlu0 %v312
    %v314 = vpop.xlane.xlu0 %313
    %v315 = vsel %vm123, %v293, 0.0
    %316 = vadd.xlane.f32.xlu0 %v315
    %v317 = vpop.xlane.xlu0 %316
    %v318 = vsub.f32 %v212, %v296
    %v319 = vsub.f32 %v213, %v299
    %v320 = vsub.f32 %v214, %v302
    %v321 = vsub.f32 %v215, %v305
    %v322 = vsub.f32 %v216, %v308
    %v323 = vsub.f32 %v217, %v311
    %v324 = vsub.f32 %v218, %v314
    %v325 = vsub.f32 %v219, %v317
    %v326 = vld [vmem:[%s3] sm:$0xff]
    %v327 = vld [vmem:[%s4] sm:$0x1]
    %329 = vset.pattern.permute.xlu0 0
    %330 = vperm.xlu0 %329, %v326
    %v331 = vpop.permute.xlu0 %330
    %v334 = vlaneseq
    %v335 = vshrl.u32 %v334, 7
    %v336 = vsub.s32 0, %v335
    %v337 = vrot.slane %v327, %v336
    %v339 = vmul.f32 %v331, %v337
    %v340 = vlaneseq
    %v341 = vshrl.u32 %v340, 7
    %s342 = smul.u32 0, 8
    %v343 = vstv %s342
    %v344 = vadd.s32 %v341, %v343
    %vm345 = vcmp.lt.s32.totalorder %v344, 8
    %v347 = vlaneseq
    %v348 = vshrl.u32 %v347, 7
    %v349 = vsub.s32 0, %v348
    %v350 = vrot.slane %v339, %v349
    %352 = vbcast.lane.b32.xlu0 %v350, 256
    %v353 = vpop.permute.xlu0 %352
    %v354 = vlaneseq
    %v355 = vshrl.u32 %v354, 7
    %v356 = vsub.s32 1, %v355
    %v357 = vrot.slane %v339, %v356
    %359 = vbcast.lane.b32.xlu0 %v357, 256
    %v360 = vpop.permute.xlu0 %359
    %v361 = vlaneseq
    %v362 = vshrl.u32 %v361, 7
    %v363 = vsub.s32 2, %v362
    %v364 = vrot.slane %v339, %v363
    %366 = vbcast.lane.b32.xlu0 %v364, 256
    %v367 = vpop.permute.xlu0 %366
    %v368 = vlaneseq
    %v369 = vshrl.u32 %v368, 7
    %v370 = vsub.s32 3, %v369
    %v371 = vrot.slane %v339, %v370
    %373 = vbcast.lane.b32.xlu0 %v371, 256
    %v374 = vpop.permute.xlu0 %373
    %v375 = vlaneseq
    %v376 = vshrl.u32 %v375, 7
    %v377 = vsub.s32 4, %v376
    %v378 = vrot.slane %v339, %v377
    %380 = vbcast.lane.b32.xlu0 %v378, 256
    %v381 = vpop.permute.xlu0 %380
    %v382 = vlaneseq
    %v383 = vshrl.u32 %v382, 7
    %v384 = vsub.s32 5, %v383
    %v385 = vrot.slane %v339, %v384
    %387 = vbcast.lane.b32.xlu0 %v385, 256
    %v388 = vpop.permute.xlu0 %387
    %v389 = vlaneseq
    %v390 = vshrl.u32 %v389, 7
    %v391 = vsub.s32 6, %v390
    %v392 = vrot.slane %v339, %v391
    %394 = vbcast.lane.b32.xlu0 %v392, 256
    %v395 = vpop.permute.xlu0 %394
    %v396 = vlaneseq
    %v397 = vshrl.u32 %v396, 7
    %v398 = vsub.s32 7, %v397
    %v399 = vrot.slane %v339, %v398
    %401 = vbcast.lane.b32.xlu0 %v399, 256
    %v402 = vpop.permute.xlu0 %401
    %v411 = vmul.f32 %v318, %v353
    %v412 = vmul.f32 %v319, %v360
    %v413 = vmul.f32 %v320, %v367
    %v414 = vmul.f32 %v321, %v374
    %v415 = vmul.f32 %v322, %v381
    %v416 = vmul.f32 %v323, %v388
    %v417 = vmul.f32 %v324, %v395
    %v418 = vmul.f32 %v325, %v402
    %427 = vset.pattern.permute.xlu0 0
    %428 = vperm.xlu0 %427, %v411
    %v429 = vpop.permute.xlu0 %428
    %430 = vset.pattern.permute.xlu0 0
    %431 = vperm.xlu0 %430, %v412
    %v432 = vpop.permute.xlu0 %431
    %433 = vset.pattern.permute.xlu0 0
    %434 = vperm.xlu0 %433, %v413
    %v435 = vpop.permute.xlu0 %434
    %436 = vset.pattern.permute.xlu0 0
    %437 = vperm.xlu0 %436, %v414
    %v438 = vpop.permute.xlu0 %437
    %439 = vset.pattern.permute.xlu0 0
    %440 = vperm.xlu0 %439, %v415
    %v441 = vpop.permute.xlu0 %440
    %442 = vset.pattern.permute.xlu0 0
    %443 = vperm.xlu0 %442, %v416
    %v444 = vpop.permute.xlu0 %443
    %445 = vset.pattern.permute.xlu0 0
    %446 = vperm.xlu0 %445, %v417
    %v447 = vpop.permute.xlu0 %446
    %448 = vset.pattern.permute.xlu0 0
    %449 = vperm.xlu0 %448, %v418
    %v450 = vpop.permute.xlu0 %449
    %v451 = vlaneseq
    %v452 = vshrl.u32 %v451, 7
    %v453 = vsub.s32 %v221, %v452
    %v454 = vrot.slane %v429, %v453
    %v455 = vlaneseq
    %v456 = vshrl.u32 %v455, 7
    %v457 = vsub.s32 %v221, %v456
    %v458 = vrot.slane %v432, %v457
    %v459 = vlaneseq
    %v460 = vshrl.u32 %v459, 7
    %v461 = vsub.s32 %v221, %v460
    %v462 = vrot.slane %v435, %v461
    %v463 = vlaneseq
    %v464 = vshrl.u32 %v463, 7
    %v465 = vsub.s32 %v221, %v464
    %v466 = vrot.slane %v438, %v465
    %v467 = vlaneseq
    %v468 = vshrl.u32 %v467, 7
    %v469 = vsub.s32 %v221, %v468
    %v470 = vrot.slane %v441, %v469
    %v471 = vlaneseq
    %v472 = vshrl.u32 %v471, 7
    %v473 = vsub.s32 %v221, %v472
    %v474 = vrot.slane %v444, %v473
    %v475 = vlaneseq
    %v476 = vshrl.u32 %v475, 7
    %v477 = vsub.s32 %v221, %v476
    %v478 = vrot.slane %v447, %v477
    %v479 = vlaneseq
    %v480 = vshrl.u32 %v479, 7
    %v481 = vsub.s32 %v221, %v480
    %v482 = vrot.slane %v450, %v481
    %vm483 = vcmask 1041409
    %v484 = vsel %vm483, %v458, %v454
    %vm485 = vcmask 1042434
    %v486 = vsel %vm485, %v462, %v484
    %vm487 = vcmask 1043459
    %v488 = vsel %vm487, %v466, %v486
    %vm489 = vcmask 1044484
    %v490 = vsel %vm489, %v470, %v488
    %vm491 = vcmask 1045509
    %v492 = vsel %vm491, %v474, %v490
    %vm493 = vcmask 1046534
    %v494 = vsel %vm493, %v478, %v492
    %vm495 = vcmask 1047559
    %v496 = vsel %vm495, %v482, %v494
    %v498 = vsel %vm345, %v496, 0.0
    %vm499 = vcmask 64512
    %v500 = vsel %vm499, %v498, 0.0
    %501 = vadd.xlane.f32.xlu0 %v500
    %v502 = vpop.xlane.xlu0 %501
    %v503 = vrot.slane %v502, 4
    %v504 = vadd.f32 %v502, %v503
    %v505 = vrot.slane %v504, 2
    %v506 = vadd.f32 %v504, %v505
    %v507 = vrot.slane %v506, 1
    %v508 = vadd.f32 %v506, %v507
    %s509 = vtos %v508
    %v510 = vstv %s509
    %511 = vst [vmem:[#allocation5] sm:$0xff] %v510
    // Predicated region
    $region26: #{tpu_custom_call.1} parent=1 // pred_check
      _
    $region27: #{tpu_custom_call.1} parent=1 // pred_check_branch
      %513 = sbr.rel (0) target = $region29
    $region28: #{tpu_custom_call.1} parent=1 // pred_region
      %s515 = ssub.s32 128, 128
      %516 = vsyncadd [#allocation4], %s515
      %s518 = sshll.u32 [#allocation5], 4
      %s519 = int_to_ptr.vmem [resolvable:$true] %s518
      %521 = dma.vmem_to_hbm [thread:$0]  %s519, 128, %s5, [#allocation4]
    $region29: #{tpu_custom_call.1} parent=1 // pred_fallthru
      _
    // Predicated region
    $region30: #{tpu_custom_call.1} parent=1 // pred_check
      _
    $region31: #{tpu_custom_call.1} parent=1 // pred_check_branch
      %523 = sbr.rel (0) target = $region33
    $region32: #{tpu_custom_call.1} parent=1 // pred_region
      %524 = dma.done [#allocation4], 128
    $region33: #{tpu_custom_call.1} parent=1 // pred_fallthru
      _
    %525 = vsyncpa [#allocation3], 1
    %526 = vsyncpa [#allocation4], 1

</llo_original>
